<compile_context>
chip_gen: v6e
topology: v6e:2x2x1
jax: 0.10.0
libtpu: 0.0.40
codegen_flags: <defaults>
</compile_context>

<pallas_src>
import functools

import jax
import jax.numpy as jnp
from jax.experimental import pallas as pl
from jax.experimental.pallas import tpu as pltpu


def _round_up(x, m):
    return (x + m - 1) // m * m


def _conv_stats_kernel(halo_ref, x_ref, w_ref, b_ref, conv_ref, stats_ref, win_ref, *,
                       C, K, DIL, HALO, TL, T, NEED_TMASK):
    """Pass 1 (per (batch, time-tile)): dilated causal conv (+bias) and per-tile,
    per-channel sum / sum-of-squares for training-mode BatchNorm."""
    j = pl.program_id(1)

    # Assemble [halo | current tile] in VMEM.  The halo is the HALO lanes of x preceding
    # this tile; for the first tile it is the causal zero padding.
    @pl.when(j == 0)
    def _():
        win_ref[:, :HALO] = jnp.zeros((C, HALO), win_ref.dtype)

    @pl.when(j > 0)
    def _():
        win_ref[:, :HALO] = halo_ref[0]

    win_ref[:, HALO:] = x_ref[0]

    # Fused K-tap conv: K accumulating MXU matmuls on shifted static slices of the window.
    acc = jnp.zeros((C, TL), jnp.float32)
    for k in range(K):
        d = (K - 1 - k) * DIL                         # causal delay of tap k
        tap = win_ref[:, HALO - d: HALO - d + TL]     # (C, TL)
        acc = acc + jnp.dot(w_ref[k], tap, preferred_element_type=jnp.float32)
    y = acc + b_ref[...]                              # bias broadcast over lanes
    conv_ref[0] = y

    def _write_stats(v):
        stats_ref[0, 0] = jnp.concatenate(
            [jnp.sum(v, axis=-1, keepdims=True),
             jnp.sum(v * v, axis=-1, keepdims=True)], axis=-1)   # (C, 2)

    if NEED_TMASK:
        last = pl.num_programs(1) - 1

        @pl.when(j == last)          # only the (single) time-padded tile pays the mask
        def _():
            lane = jax.lax.broadcasted_iota(jnp.int32, (1, TL), 1) + j * TL
            _write_stats(jnp.where(lane < T, y, jnp.float32(0.0)))

        @pl.when(j != last)
        def _():
            _write_stats(y)
    else:
        _write_stats(y)


def _bn_relu_residual_kernel(conv_ref, x_ref, ss_ref, o_ref):
    """Pass 2: out = x + relu(conv * scale + shift)  (pure FMA + max + add stream)."""
    scale = ss_ref[:, 0:1]
    shift = ss_ref[:, 1:2]
    y = conv_ref[0] * scale + shift
    o_ref[0] = x_ref[0] + jnp.maximum(y, jnp.float32(0.0))


def residual_unit(x, weight, bias, gamma, beta, *, dilation, eps=1e-5,
                  use_bf16_matmul=False, max_lane_tile=2048):
    """x: (N, C, T) f32; weight: (C_out, C_in, K); bias/gamma/beta: (C,)."""
    N, C, T = x.shape
    C_out, C_in, K = weight.shape
    assert C_out == C_in == C, "residual add requires in_channels == out_channels"
    pad = dilation * (K - 1)

    mm_dtype = jnp.bfloat16 if use_bf16_matmul else jnp.float32
    esz = 2 if use_bf16_matmul else 4

    # Halo width: power-of-two multiple of 128 covering the causal receptive field, so it
    # always divides the (power-of-two multiple of 128) time tile.
    HALO = 128
    while HALO < pad:
        HALO *= 2

    # Generation-aware VMEM budget (v7x: 64 MiB physical; v5e/v6e: 128 MiB).
    try:
        vmem_cap = pltpu.get_tpu_info().vmem_capacity_bytes
    except Exception:
        vmem_cap = 64 * 1024 * 1024
    vmem_limit = int(min(vmem_cap // 2, 64 * 1024 * 1024))
    budget = int(vmem_limit * 0.7)

    # Time-tile size: largest power-of-two multiple of 128 whose double-buffered working set
    # fits the budget.  For N == 1 force >= 2 time tiles so both v7x TensorCores get work.
    tl_cap = _round_up(T, 128)
    if N == 1 and tl_cap >= 256:
        tl_cap = _round_up((T + 1) // 2, 128)
    tl_cap = max(tl_cap, HALO)
    tl_cap = min(tl_cap, max(max_lane_tile, HALO))

    TL = HALO
    cand = HALO
    while cand <= tl_cap:
        p1 = (2 * C * cand * (esz + 4)          # x tile + f32 conv tile (double-buffered)
              + 2 * C * HALO * esz              # halo tile
              + C * (HALO + cand) * esz         # window scratch
              + 2 * K * C * C * esz + 8192)     # weights + slack
        p2 = 2 * C * cand * 12 + 8192           # conv + residual + out (all f32)
        if max(p1, p2) <= budget:
            TL = cand
        cand *= 2

    T_pad = _round_up(T, TL)
    num_t = T_pad // TL
    halo_ratio = TL // HALO

    x = x.astype(jnp.float32)
    xr = x if T_pad == T else jnp.pad(x, ((0, 0), (0, 0), (0, T_pad - T)))
    x_mm = xr.astype(mm_dtype) if use_bf16_matmul else xr            # pass-1 matmul operand
    wk = jnp.transpose(weight.astype(jnp.float32), (2, 0, 1)).astype(mm_dtype)  # (K, C, C)
    b2 = bias.astype(jnp.float32).reshape(C, 1)

    cparams = pltpu.CompilerParams(
        dimension_semantics=("parallel", "parallel"),
        vmem_limit_bytes=vmem_limit)

    # ---- pass 1: causal dilated conv (+bias) and per-tile channel statistics ----
    conv, stats = pl.pallas_call(
        functools.partial(_conv_stats_kernel, C=C, K=K, DIL=dilation, HALO=HALO,
                          TL=TL, T=T, NEED_TMASK=(T_pad != T)),
        out_shape=(jax.ShapeDtypeStruct((N, C, T_pad), jnp.float32),
                   jax.ShapeDtypeStruct((N, num_t, C, 2), jnp.float32)),
        grid=(N, num_t),
        in_specs=[
            # HALO lanes preceding this tile (same HBM array as the main tile, finer blocking)
            pl.BlockSpec((1, C, HALO),
                         lambda n, j: (n, 0, jnp.maximum(j * halo_ratio - 1, 0))),
            pl.BlockSpec((1, C, TL), lambda n, j: (n, 0, j)),        # current tile
            pl.BlockSpec((K, C, C), lambda n, j: (0, 0, 0)),         # weights (resident)
            pl.BlockSpec((C, 1), lambda n, j: (0, 0)),               # bias
        ],
        out_specs=(pl.BlockSpec((1, C, TL), lambda n, j: (n, 0, j)),
                   pl.BlockSpec((1, 1, C, 2), lambda n, j: (n, j, 0, 0))),
        scratch_shapes=[pltpu.VMEM((C, HALO + TL), mm_dtype)],
        compiler_params=cparams,
    )(x_mm, x_mm, wk, b2)

    # Tiny reduction + BN affine folding in the wrapper keeps both grids fully parallel and
    # makes pass 2 a pure elementwise stream.
    totals = jnp.sum(stats, axis=(0, 1))                             # (C, 2)
    count = jnp.float32(N * T)
    mean = totals[:, 0] / count
    # TODO(synk): E[x^2]-E[x]^2 can lose precision for very large N*T; switch to a shifted
    #             (centered) accumulation if tighter BN-variance tolerances are required.
    var = jnp.maximum(totals[:, 1] / count - mean * mean, jnp.float32(0.0))
    scale = gamma.astype(jnp.float32) * jax.lax.rsqrt(var + jnp.float32(eps))
    shift = beta.astype(jnp.float32) - mean * scale
    ss = jnp.stack([scale, shift], axis=-1)                          # (C, 2)

    # ---- pass 2: normalize (training-mode BN), ReLU, residual add ----
    out = pl.pallas_call(
        _bn_relu_residual_kernel,
        out_shape=jax.ShapeDtypeStruct((N, C, T_pad), jnp.float32),
        grid=(N, num_t),
        in_specs=[pl.BlockSpec((1, C, TL), lambda n, j: (n, 0, j)),   # conv result
                  pl.BlockSpec((1, C, TL), lambda n, j: (n, 0, j)),   # residual = f32 x (reused)
                  pl.BlockSpec((C, 2), lambda n, j: (0, 0))],         # [scale, shift]
        out_specs=pl.BlockSpec((1, C, TL), lambda n, j: (n, 0, j)),
        compiler_params=cparams,
    )(conv, xr, ss)

    return out if T_pad == T else out[:, :, :T]


def _reference(x, weight, bias, gamma, beta, *, dilation, eps=1e-5):
    """Pure-JAX reference matching the PyTorch module's forward (training-mode BN)."""
    pad = dilation * (weight.shape[2] - 1)
    xp = jnp.pad(x, ((0, 0), (0, 0), (pad, 0)))
    y = jax.lax.conv_general_dilated(
        xp, weight, window_strides=(1,), padding="VALID",
        rhs_dilation=(dilation,), dimension_numbers=("NCH", "OIH", "NCH"))
    y = y + bias[None, :, None]
    mean = y.mean(axis=(0, 2), keepdims=True)
    var = ((y - mean) ** 2).mean(axis=(0, 2), keepdims=True)
    y = (y - mean) / jnp.sqrt(var + eps) * gamma[None, :, None] + beta[None, :, None]
    return x + jnp.maximum(y, 0.0)


if __name__ == "__main__":
    # Small shapes implied by the module: batch=2, channels=4, time=16, kernel=3, dilation=2.
    N, C, T = 2, 4, 16
    K, DIL = 3, 2

    key = jax.random.PRNGKey(0)
    kx, kw, kb, kg, kbt = jax.random.split(key, 5)
    x = jax.random.normal(kx, (N, C, T), dtype=jnp.float32)
    weight = jax.random.normal(kw, (C, C, K), dtype=jnp.float32) * 0.2
    bias = jax.random.normal(kb, (C,), dtype=jnp.float32) * 0.1
    gamma = 1.0 + 0.1 * jax.random.normal(kg, (C,), dtype=jnp.float32)
    beta = 0.1 * jax.random.normal(kbt, (C,), dtype=jnp.float32)

    out = residual_unit(x, weight, bias, gamma, beta, dilation=DIL)
    out = jax.block_until_ready(out)

    ref = _reference(x, weight, bias, gamma, beta, dilation=DIL)
    assert out.shape == (N, C, T)
    assert jnp.allclose(out, ref, atol=2e-4, rtol=2e-4), "mismatch vs reference"

    print("KERNEL_OK")
</pallas_src>

<mosaic_0001>
module attributes {stable_mosaic.version = 11 : i64} {
  func.func @_conv_stats_kernel(%arg0: i32, %arg1: i32, %arg2: memref<1x4x128xf32, #tpu.memory_space<vmem>>, %arg3: memref<1x4x128xf32, #tpu.memory_space<vmem>>, %arg4: memref<3x4x4xf32, #tpu.memory_space<vmem>>, %arg5: memref<4x1xf32, #tpu.memory_space<vmem>>, %arg6: memref<1x4x128xf32, #tpu.memory_space<vmem>>, %arg7: memref<1x1x4x2xf32, #tpu.memory_space<vmem>>, %arg8: memref<4x256xf32, #tpu.memory_space<vmem>>) attributes {dimension_semantics = [#tpu.dimension_semantics<parallel>, #tpu.dimension_semantics<parallel>], iteration_bounds = array<i64: 2, 1>, scalar_prefetch = 0 : i64, scratch_operands = 1 : i64, tpu.core_type = #tpu.core_type<tc>, window_params = [{transform_indices = @transform_0, window_bounds = array<i64: 1, 4, 128>}, {transform_indices = @transform_1, window_bounds = array<i64: 1, 4, 128>}, {pipeline_mode = #tpu.pipeline_mode<synchronous>, transform_indices = @transform_2, window_bounds = array<i64: 3, 4, 4>}, {pipeline_mode = #tpu.pipeline_mode<synchronous>, transform_indices = @transform_3, window_bounds = array<i64: 4, 1>}, {transform_indices = @transform_4, window_bounds = array<i64: 1, 4, 128>}, {transform_indices = @transform_5, window_bounds = array<i64: 1, 1, 4, 2>}]} {
    %c0_i32 = arith.constant 0 : i32
    %0 = arith.cmpi eq, %arg1, %c0_i32 : i32
    %1 = arith.extui %0 : i1 to i32
    %c0_i32_0 = arith.constant 0 : i32
    %2 = arith.cmpi ne, %1, %c0_i32_0 : i32
    scf.if %2 {
      %cst_29 = arith.constant 0.000000e+00 : f32
      %37 = vector.broadcast %cst_29 : f32 to vector<4x128xf32>
      %c0_30 = arith.constant 0 : index
      %c0_31 = arith.constant 0 : index
      %38 = vector.load %arg8[%c0_30, %c0_31] : memref<4x256xf32, #tpu.memory_space<vmem>>, vector<4x128xf32>
      tpu.vector_store %arg8[%c0_30, %c0_31], %37 {strides = array<i32>} : memref<4x256xf32, #tpu.memory_space<vmem>>, vector<4x128xf32>,
    } else {
    }
    %c0_i32_1 = arith.constant 0 : i32
    %3 = arith.cmpi sgt, %arg1, %c0_i32_1 : i32
    %4 = arith.extui %3 : i1 to i32
    %c0_i32_2 = arith.constant 0 : i32
    %5 = arith.cmpi ne, %4, %c0_i32_2 : i32
    scf.if %5 {
      %c0_29 = arith.constant 0 : index
      %c0_30 = arith.constant 0 : index
      %c0_31 = arith.constant 0 : index
      %37 = vector.load %arg2[%c0_29, %c0_30, %c0_31] : memref<1x4x128xf32, #tpu.memory_space<vmem>>, vector<1x4x128xf32>
      %38 = vector.shape_cast %37 : vector<1x4x128xf32> to vector<4x128xf32>
      %c0_32 = arith.constant 0 : index
      %c0_33 = arith.constant 0 : index
      %39 = vector.load %arg8[%c0_32, %c0_33] : memref<4x256xf32, #tpu.memory_space<vmem>>, vector<4x128xf32>
      tpu.vector_store %arg8[%c0_32, %c0_33], %38 {strides = array<i32>} : memref<4x256xf32, #tpu.memory_space<vmem>>, vector<4x128xf32>,
    } else {
    }
    %c0 = arith.constant 0 : index
    %c0_3 = arith.constant 0 : index
    %c0_4 = arith.constant 0 : index
    %6 = vector.load %arg3[%c0, %c0_3, %c0_4] : memref<1x4x128xf32, #tpu.memory_space<vmem>>, vector<1x4x128xf32>
    %7 = vector.shape_cast %6 : vector<1x4x128xf32> to vector<4x128xf32>
    %c0_5 = arith.constant 0 : index
    %c128 = arith.constant 128 : index
    %8 = vector.load %arg8[%c0_5, %c128] : memref<4x256xf32, #tpu.memory_space<vmem>>, vector<4x128xf32>
    tpu.vector_store %arg8[%c0_5, %c128], %7 {strides = array<i32>} : memref<4x256xf32, #tpu.memory_space<vmem>>, vector<4x128xf32>,
    %cst = arith.constant 0.000000e+00 : f32
    %9 = vector.broadcast %cst : f32 to vector<4x128xf32>
    %c0_6 = arith.constant 0 : index
    %c124 = arith.constant 124 : index
    %10 = vector.load %arg8[%c0_6, %c124] : memref<4x256xf32, #tpu.memory_space<vmem>>, vector<4x128xf32>
    %c0_7 = arith.constant 0 : index
    %c0_8 = arith.constant 0 : index
    %c0_9 = arith.constant 0 : index
    %11 = vector.load %arg4[%c0_7, %c0_8, %c0_9] : memref<3x4x4xf32, #tpu.memory_space<vmem>>, vector<1x4x4xf32>
    %12 = vector.shape_cast %11 : vector<1x4x4xf32> to vector<4x4xf32>
    %cst_10 = arith.constant dense<0.000000e+00> : vector<4x128xf32>
    %13 = tpu.matmul %12, %10, %cst_10 {dimension_numbers = #tpu.dot_dimension_numbers<[1], [0], [0], [1], [0, 0, 1, 1], [], []>} : vector<4x4xf32>, vector<4x128xf32>, vector<4x128xf32> -> vector<4x128xf32>
    %14 = arith.addf %9, %13 : vector<4x128xf32>
    %c0_11 = arith.constant 0 : index
    %c126 = arith.constant 126 : index
    %15 = vector.load %arg8[%c0_11, %c126] : memref<4x256xf32, #tpu.memory_space<vmem>>, vector<4x128xf32>
    %c1 = arith.constant 1 : index
    %c0_12 = arith.constant 0 : index
    %c0_13 = arith.constant 0 : index
    %16 = vector.load %arg4[%c1, %c0_12, %c0_13] : memref<3x4x4xf32, #tpu.memory_space<vmem>>, vector<1x4x4xf32>
    %17 = vector.shape_cast %16 : vector<1x4x4xf32> to vector<4x4xf32>
    %cst_14 = arith.constant dense<0.000000e+00> : vector<4x128xf32>
    %18 = tpu.matmul %17, %15, %cst_14 {dimension_numbers = #tpu.dot_dimension_numbers<[1], [0], [0], [1], [0, 0, 1, 1], [], []>} : vector<4x4xf32>, vector<4x128xf32>, vector<4x128xf32> -> vector<4x128xf32>
    %19 = arith.addf %14, %18 : vector<4x128xf32>
    %c0_15 = arith.constant 0 : index
    %c128_16 = arith.constant 128 : index
    %20 = vector.load %arg8[%c0_15, %c128_16] : memref<4x256xf32, #tpu.memory_space<vmem>>, vector<4x128xf32>
    %c2 = arith.constant 2 : index
    %c0_17 = arith.constant 0 : index
    %c0_18 = arith.constant 0 : index
    %21 = vector.load %arg4[%c2, %c0_17, %c0_18] : memref<3x4x4xf32, #tpu.memory_space<vmem>>, vector<1x4x4xf32>
    %22 = vector.shape_cast %21 : vector<1x4x4xf32> to vector<4x4xf32>
    %cst_19 = arith.constant dense<0.000000e+00> : vector<4x128xf32>
    %23 = tpu.matmul %22, %20, %cst_19 {dimension_numbers = #tpu.dot_dimension_numbers<[1], [0], [0], [1], [0, 0, 1, 1], [], []>} : vector<4x4xf32>, vector<4x128xf32>, vector<4x128xf32> -> vector<4x128xf32>
    %24 = arith.addf %19, %23 : vector<4x128xf32>
    %c0_20 = arith.constant 0 : index
    %c0_21 = arith.constant 0 : index
    %25 = vector.load %arg5[%c0_20, %c0_21] : memref<4x1xf32, #tpu.memory_space<vmem>>, vector<4x1xf32>
    %26 = vector.broadcast %25 : vector<4x1xf32> to vector<4x128xf32>
    %27 = arith.addf %24, %26 : vector<4x128xf32>
    %c0_22 = arith.constant 0 : index
    %c0_23 = arith.constant 0 : index
    %c0_24 = arith.constant 0 : index
    %28 = vector.load %arg6[%c0_22, %c0_23, %c0_24] : memref<1x4x128xf32, #tpu.memory_space<vmem>>, vector<1x4x128xf32>
    %29 = vector.shape_cast %28 : vector<1x4x128xf32> to vector<4x128xf32>
    %30 = vector.shape_cast %27 : vector<4x128xf32> to vector<1x4x128xf32>
    tpu.vector_store %arg6[%c0_22, %c0_23, %c0_24], %30 {strides = array<i32>} : memref<1x4x128xf32, #tpu.memory_space<vmem>>, vector<1x4x128xf32>,
    %c0_i32_25 = arith.constant 0 : i32
    %31 = arith.cmpi eq, %arg1, %c0_i32_25 : i32
    %32 = arith.extui %31 : i1 to i32
    %c0_i32_26 = arith.constant 0 : i32
    %33 = arith.cmpi ne, %32, %c0_i32_26 : i32
    scf.if %33 {
      %37 = tpu.iota {dimensions = array<i32: 1>} : vector<1x128xi32>
      %c128_i32 = arith.constant 128 : i32
      %38 = arith.muli %arg1, %c128_i32 : i32
      %39 = vector.broadcast %38 : i32 to vector<1x128xi32>
      %40 = arith.addi %37, %39 : vector<1x128xi32>
      %c16_i32 = arith.constant 16 : i32
      %41 = vector.broadcast %c16_i32 : i32 to vector<1x128xi32>
      %42 = arith.cmpi slt, %40, %41 : vector<1x128xi32>
      %cst_29 = arith.constant 0.000000e+00 : f32
      %43 = vector.shape_cast %42 : vector<1x128xi1> to vector<1x128xi1>
      %44 = vector.broadcast %43 : vector<1x128xi1> to vector<4x128xi1>
      %45 = vector.broadcast %cst_29 : f32 to vector<4x128xf32>
      %46 = arith.select %44, %27, %45 : vector<4x128xi1>, vector<4x128xf32>
      %cst_30 = arith.constant dense<0.000000e+00> : vector<4xf32>
      %47 = vector.multi_reduction <add>, %46, %cst_30 [1] : vector<4x128xf32> to vector<4xf32>
      %48 = vector.shape_cast %47 : vector<4xf32> to vector<4x1xf32>
      %49 = arith.mulf %46, %46 : vector<4x128xf32>
      %cst_31 = arith.constant dense<0.000000e+00> : vector<4xf32>
      %50 = vector.multi_reduction <add>, %49, %cst_31 [1] : vector<4x128xf32> to vector<4xf32>
      %51 = vector.shape_cast %50 : vector<4xf32> to vector<4x1xf32>
      %52 = tpu.concatenate %48, %51 in 1 : vector<4x1xf32>, vector<4x1xf32> -> vector<4x2xf32>
      %c0_32 = arith.constant 0 : index
      %c0_33 = arith.constant 0 : index
      %c0_34 = arith.constant 0 : index
      %c0_35 = arith.constant 0 : index
      %53 = vector.load %arg7[%c0_32, %c0_33, %c0_34, %c0_35] : memref<1x1x4x2xf32, #tpu.memory_space<vmem>>, vector<1x1x4x2xf32>
      %54 = vector.shape_cast %53 : vector<1x1x4x2xf32> to vector<4x2xf32>
      %55 = vector.shape_cast %52 : vector<4x2xf32> to vector<1x1x4x2xf32>
      tpu.vector_store %arg7[%c0_32, %c0_33, %c0_34, %c0_35], %55 {strides = array<i32>} : memref<1x1x4x2xf32, #tpu.memory_space<vmem>>, vector<1x1x4x2xf32>,
    } else {
    }
    %c0_i32_27 = arith.constant 0 : i32
    %34 = arith.cmpi ne, %arg1, %c0_i32_27 : i32
    %35 = arith.extui %34 : i1 to i32
    %c0_i32_28 = arith.constant 0 : i32
    %36 = arith.cmpi ne, %35, %c0_i32_28 : i32
    scf.if %36 {
      %cst_29 = arith.constant dense<0.000000e+00> : vector<4xf32>
      %37 = vector.multi_reduction <add>, %27, %cst_29 [1] : vector<4x128xf32> to vector<4xf32>
      %38 = vector.shape_cast %37 : vector<4xf32> to vector<4x1xf32>
      %39 = arith.mulf %27, %27 : vector<4x128xf32>
      %cst_30 = arith.constant dense<0.000000e+00> : vector<4xf32>
      %40 = vector.multi_reduction <add>, %39, %cst_30 [1] : vector<4x128xf32> to vector<4xf32>
      %41 = vector.shape_cast %40 : vector<4xf32> to vector<4x1xf32>
      %42 = tpu.concatenate %38, %41 in 1 : vector<4x1xf32>, vector<4x1xf32> -> vector<4x2xf32>
      %c0_31 = arith.constant 0 : index
      %c0_32 = arith.constant 0 : index
      %c0_33 = arith.constant 0 : index
      %c0_34 = arith.constant 0 : index
      %43 = vector.load %arg7[%c0_31, %c0_32, %c0_33, %c0_34] : memref<1x1x4x2xf32, #tpu.memory_space<vmem>>, vector<1x1x4x2xf32>
      %44 = vector.shape_cast %43 : vector<1x1x4x2xf32> to vector<4x2xf32>
      %45 = vector.shape_cast %42 : vector<4x2xf32> to vector<1x1x4x2xf32>
      tpu.vector_store %arg7[%c0_31, %c0_32, %c0_33, %c0_34], %45 {strides = array<i32>} : memref<1x1x4x2xf32, #tpu.memory_space<vmem>>, vector<1x1x4x2xf32>,
    } else {
    }
    return
  }
  func.func @transform_0(%arg0: i32, %arg1: i32) -> (i32, i32, i32) {
    %c1_i32 = arith.constant 1 : i32
    %0 = arith.muli %arg1, %c1_i32 : i32
    %c1_i32_0 = arith.constant 1 : i32
    %1 = arith.subi %0, %c1_i32_0 : i32
    %c0_i32 = arith.constant 0 : i32
    %2 = arith.maxsi %1, %c0_i32 : i32
    %c0_i32_1 = arith.constant 0 : i32
    %c0_i32_2 = arith.constant 0 : i32
    return %arg0, %c0_i32_1, %2 : i32, i32, i32
  }
  func.func @transform_1(%arg0: i32, %arg1: i32) -> (i32, i32, i32) {
    %c0_i32 = arith.constant 0 : i32
    %c0_i32_0 = arith.constant 0 : i32
    return %arg0, %c0_i32, %arg1 : i32, i32, i32
  }
  func.func @transform_2(%arg0: i32, %arg1: i32) -> (i32, i32, i32) {
    %c0_i32 = arith.constant 0 : i32
    %c0_i32_0 = arith.constant 0 : i32
    %c0_i32_1 = arith.constant 0 : i32
    %c0_i32_2 = arith.constant 0 : i32
    return %c0_i32, %c0_i32_0, %c0_i32_1 : i32, i32, i32
  }
  func.func @transform_3(%arg0: i32, %arg1: i32) -> (i32, i32) {
    %c0_i32 = arith.constant 0 : i32
    %c0_i32_0 = arith.constant 0 : i32
    %c0_i32_1 = arith.constant 0 : i32
    return %c0_i32, %c0_i32_0 : i32, i32
  }
  func.func @transform_4(%arg0: i32, %arg1: i32) -> (i32, i32, i32) {
    %c0_i32 = arith.constant 0 : i32
    %c0_i32_0 = arith.constant 0 : i32
    return %arg0, %c0_i32, %arg1 : i32, i32, i32
  }
  func.func @transform_5(%arg0: i32, %arg1: i32) -> (i32, i32, i32, i32) {
    %c0_i32 = arith.constant 0 : i32
    %c0_i32_0 = arith.constant 0 : i32
    %c0_i32_1 = arith.constant 0 : i32
    return %arg0, %arg1, %c0_i32, %c0_i32_0 : i32, i32, i32, i32
  }
}

</mosaic_0001>

<llo_original>
// kernel: tpu_custom_call.1
$region0: #{tpu_custom_call.1}
  #allocation0 [shape = 'u32[]', space=smem, size = 0x4, offset = 0x4, fixed_abs, tag = 'smem constant byte address 0x4 - core index']
  #allocation1 [shape = 'u32[144,128]{1,0:T(1,128)}', space=vmem, size = 0x12000, scoped, tag = 'internal scratch']
  #allocation2 [shape = 'f32[4,256]{1,0:T(4,128)}', space=vmem, size = 0x1000, scoped, tag = 'scratch operand']
  %s0 = inlined_call_operand.hbm [shape: f32[2,4,128], index: 0, kind: input, shape index: {}]
  %s1 = inlined_call_operand.hbm [shape: f32[2,4,128], index: 1, kind: input, shape index: {}]
  %s2 = inlined_call_operand.hbm [shape: f32[3,4,4], index: 2, kind: input, shape index: {}]
  %s3 = inlined_call_operand.vmem [shape: f32[4,1], index: 3, kind: input, shape index: {}]
  %s4 = inlined_call_operand.hbm [shape: f32[2,4,128], index: 4, kind: output, shape index: {0}]
  %s5 = inlined_call_operand.vmem [shape: f32[2,1,4,2], index: 5, kind: output, shape index: {1}]
  %6 = xla_tuple %s4, %s5
  %s7 = sld [smem:[#allocation0]]
  $region85: #{tpu_custom_call.1} parent=0
    _
  %s9 = ssub.s32 1, %s7
  %s10 = scalar_select 0, %s9, %s7
  $region1: #{tpu_custom_call.1} parent=0
    #allocation3 [shape = 'u8[4096]{0}', space=vmem, size = 0x1000, scoped, tag = 'input window, operand 0']
    #allocation4 [shape = 's32[2]{0}', space=sflag, size = 0x8, scoped, tag = 'scoped memory for tpu_custom_call.1']
    #allocation5 [shape = 's32[2]{0}', space=sflag, size = 0x8, scoped, tag = 'scoped memory for tpu_custom_call.1']
    #allocation6 [shape = 'u8[4096]{0}', space=vmem, size = 0x1000, scoped, tag = 'input window, operand 1']
    #allocation7 [shape = 's32[2]{0}', space=sflag, size = 0x8, scoped, tag = 'scoped memory for tpu_custom_call.1']
    #allocation8 [shape = 'u8[6144]{0}', space=vmem, size = 0x1800, scoped, tag = 'input window, operand 2, single buffered']
    #allocation9 [shape = 'u8[4096]{0}', space=vmem, size = 0x1000, scoped, tag = 'output window, operand 0']
    %11 = vsyncpa [#allocation4], 0
    %s12 = scalar_lea.sflag [#allocation4], 1
    %13 = vsyncpa %s12, 0
    %14 = vsyncpa [#allocation7], 0
    %s15 = scalar_lea.sflag [#allocation7], 1
    %16 = vsyncpa %s15, 0
    %17 = vsyncpa [#allocation5], 0
    %s18 = scalar_lea.sflag [#allocation5], 1
    %19 = vsyncpa %s18, 0
    loop: start=0, step=1, limit=4
    $region2: #{tpu_custom_call.1} parent=1 // loop_pre_header
      _
    $region3: #{tpu_custom_call.1} parent=1 // loop_header
      %s21 = sphi 0, %s25
      %p22 = scmp.ge.s32.totalorder %s21, 4
      %s28 = sphi 0, %s40
      %s29 = sphi 0, %s36
      %s30 = sphi 0, %s28
      %s31 = sphi 0, %s29
      %s32 = sphi 0, %s30
      %s33 = sphi 0, %s31
      %s51 = sphi 0, %s53
      %s54 = sphi 0, %s51
      %s55 = sphi 0, %s54
      %s71 = sphi 0, %s55
      %s79 = sphi 0, %s81
      %s82 = sphi 0, %s79
      %s83 = sphi 0, %s82
      %s99 = sphi 0, %s83
      %s103 = sphi 0, %s103
      %s105 = sphi 0, %s103
      %s106 = sphi 0, %s105
      %s120 = sphi 0, %s106
      %s124 = sphi 0, %s124
      %s126 = sphi 0, %s124
      %s127 = sphi 0, %s126
      %s141 = sphi 0, %s127
      %s149 = sphi 0, %s151
      %s152 = sphi 0, %s149
      %s153 = sphi 0, %s152
      %s169 = sphi 0, %s153
      %s177 = sphi 0, %s179
      %s180 = sphi 0, %s177
      %s181 = sphi 0, %s180
      %s197 = sphi 0, %s181
    $region4: #{tpu_custom_call.1} parent=1 // loop_header_branch
      %24 = sbr.rel (%p22) target = $region8
    $region5: #{tpu_custom_call.1} parent=1 // loop_body
      %s26 = ssub.s32 %s21, 1
      %s27 = ssub.s32 %s21, 2
      %s34 = sadd.s32 1, %s29
      %p35 = scmp.ge.s32.totalorder %s34, 1
      %s36 = scalar_select %p35, 0, %s34
      %s37 = sadd.s32 1, %s28
      %s38 = scalar_select %p35, %s37, %s28
      %p39 = scmp.ge.s32.totalorder %s38, 2
      %s40 = scalar_select %p39, 0, %s38
      %s41 = ssub.s32 %s29, 1
      %p42 = scmp.gt.s32.totalorder %s41, 0
      %s43 = scalar_select %p42, %s41, 0
      %s44 = ssub.s32 %s36, 1
      %p45 = scmp.gt.s32.totalorder %s44, 0
      %s46 = scalar_select %p45, %s44, 0
      %s47 = ssub.s32 %s28, %s40
      %s48 = ssub.s32 %s43, %s46
      %s49 = sor.u32 %s47, %s48
      %p50 = scmp.eq.s32.totalorder %s49, 0
      %s52 = sadd.s32 %s51, 1
      %s53 = scalar_select %p50, %s51, %s52
      %p56 = pneg %p50
      %p57 = scmp.eq.s32.totalorder %s21, 1
      %p58 = por %p56, %p57
      %p59 = scmp.ne.s32.totalorder %s51, %s54
      %p60 = scmp.eq.s32.totalorder %s21, 0
      %p61 = por %p59, %p60
      %p62 = scmp.ne.s32.totalorder %s51, %s54
      %p63 = scmp.eq.s32.totalorder %s26, 1
      %p64 = por %p62, %p63
      %p65 = scmp.ne.s32.totalorder %s54, %s55
      %p66 = scmp.eq.s32.totalorder %s26, 0
      %p67 = por %p65, %p66
      %p68 = scmp.ne.s32.totalorder %s54, %s55
      %p69 = scmp.eq.s32.totalorder %s27, 1
      %p70 = por %p68, %p69
      %p72 = scmp.ne.s32.totalorder %s55, %s71
      %p73 = scmp.eq.s32.totalorder %s27, 0
      %p74 = por %p72, %p73
      %s75 = ssub.s32 %s28, %s40
      %s76 = ssub.s32 %s29, %s36
      %s77 = sor.u32 %s75, %s76
      %p78 = scmp.eq.s32.totalorder %s77, 0
      %s80 = sadd.s32 %s79, 1
      %s81 = scalar_select %p78, %s79, %s80
      %p84 = pneg %p78
      %p85 = scmp.eq.s32.totalorder %s21, 1
      %p86 = por %p84, %p85
      %p87 = scmp.ne.s32.totalorder %s79, %s82
      %p88 = scmp.eq.s32.totalorder %s21, 0
      %p89 = por %p87, %p88
      %p90 = scmp.ne.s32.totalorder %s79, %s82
      %p91 = scmp.eq.s32.totalorder %s26, 1
      %p92 = por %p90, %p91
      %p93 = scmp.ne.s32.totalorder %s82, %s83
      %p94 = scmp.eq.s32.totalorder %s26, 0
      %p95 = por %p93, %p94
      %p96 = scmp.ne.s32.totalorder %s82, %s83
      %p97 = scmp.eq.s32.totalorder %s27, 1
      %p98 = por %p96, %p97
      %p100 = scmp.ne.s32.totalorder %s83, %s99
      %p101 = scmp.eq.s32.totalorder %s27, 0
      %p102 = por %p100, %p101
      %s104 = sadd.s32 %s103, 1
      %p107 = scmp.eq.s32.totalorder %s21, 1
      %p108 = scmp.ne.s32.totalorder %s103, %s105
      %p109 = scmp.eq.s32.totalorder %s21, 0
      %p110 = por %p108, %p109
      %p111 = scmp.ne.s32.totalorder %s103, %s105
      %p112 = scmp.eq.s32.totalorder %s26, 1
      %p113 = por %p111, %p112
      %p114 = scmp.ne.s32.totalorder %s105, %s106
      %p115 = scmp.eq.s32.totalorder %s26, 0
      %p116 = por %p114, %p115
      %p117 = scmp.ne.s32.totalorder %s105, %s106
      %p118 = scmp.eq.s32.totalorder %s27, 1
      %p119 = por %p117, %p118
      %p121 = scmp.ne.s32.totalorder %s106, %s120
      %p122 = scmp.eq.s32.totalorder %s27, 0
      %p123 = por %p121, %p122
      %s125 = sadd.s32 %s124, 1
      %p128 = scmp.eq.s32.totalorder %s21, 1
      %p129 = scmp.ne.s32.totalorder %s124, %s126
      %p130 = scmp.eq.s32.totalorder %s21, 0
      %p131 = por %p129, %p130
      %p132 = scmp.ne.s32.totalorder %s124, %s126
      %p133 = scmp.eq.s32.totalorder %s26, 1
      %p134 = por %p132, %p133
      %p135 = scmp.ne.s32.totalorder %s126, %s127
      %p136 = scmp.eq.s32.totalorder %s26, 0
      %p137 = por %p135, %p136
      %p138 = scmp.ne.s32.totalorder %s126, %s127
      %p139 = scmp.eq.s32.totalorder %s27, 1
      %p140 = por %p138, %p139
      %p142 = scmp.ne.s32.totalorder %s127, %s141
      %p143 = scmp.eq.s32.totalorder %s27, 0
      %p144 = por %p142, %p143
      %s145 = ssub.s32 %s28, %s40
      %s146 = ssub.s32 %s29, %s36
      %s147 = sor.u32 %s145, %s146
      %p148 = scmp.eq.s32.totalorder %s147, 0
      %s150 = sadd.s32 %s149, 1
      %s151 = scalar_select %p148, %s149, %s150
      %p154 = pneg %p148
      %p155 = scmp.eq.s32.totalorder %s21, 1
      %p156 = por %p154, %p155
      %p157 = scmp.ne.s32.totalorder %s149, %s152
      %p158 = scmp.eq.s32.totalorder %s21, 0
      %p159 = por %p157, %p158
      %p160 = scmp.ne.s32.totalorder %s149, %s152
      %p161 = scmp.eq.s32.totalorder %s26, 1
      %p162 = por %p160, %p161
      %p163 = scmp.ne.s32.totalorder %s152, %s153
      %p164 = scmp.eq.s32.totalorder %s26, 0
      %p165 = por %p163, %p164
      %p166 = scmp.ne.s32.totalorder %s152, %s153
      %p167 = scmp.eq.s32.totalorder %s27, 1
      %p168 = por %p166, %p167
      %p170 = scmp.ne.s32.totalorder %s153, %s169
      %p171 = scmp.eq.s32.totalorder %s27, 0
      %p172 = por %p170, %p171
      %s173 = ssub.s32 %s28, %s40
      %s174 = ssub.s32 %s29, %s36
      %s175 = sor.u32 %s173, %s174
      %p176 = scmp.eq.s32.totalorder %s175, 0
      %s178 = sadd.s32 %s177, 1
      %s179 = scalar_select %p176, %s177, %s178
      %p182 = pneg %p176
      %p183 = scmp.eq.s32.totalorder %s21, 1
      %p184 = por %p182, %p183
      %p185 = scmp.ne.s32.totalorder %s177, %s180
      %p186 = scmp.eq.s32.totalorder %s21, 0
      %p187 = por %p185, %p186
      %p188 = scmp.ne.s32.totalorder %s177, %s180
      %p189 = scmp.eq.s32.totalorder %s26, 1
      %p190 = por %p188, %p189
      %p191 = scmp.ne.s32.totalorder %s180, %s181
      %p192 = scmp.eq.s32.totalorder %s26, 0
      %p193 = por %p191, %p192
      %p194 = scmp.ne.s32.totalorder %s180, %s181
      %p195 = scmp.eq.s32.totalorder %s27, 1
      %p196 = por %p194, %p195
      %p198 = scmp.ne.s32.totalorder %s181, %s197
      %p199 = scmp.eq.s32.totalorder %s27, 0
      %p200 = por %p198, %p199
      %p201 = scmp.le.s32.totalorder 1, %s21
      %p202 = scmp.lt.s32.totalorder %s21, 3
      %p203 = pnand %p201, %p202
      %p204 = pneg %p203
      // Predicated region
      $region9: #{tpu_custom_call.1} parent=5 // pred_check
        _
      $region10: #{tpu_custom_call.1} parent=5 // pred_check_branch
        %206 = sbr.rel (%p203) target = $region12
      $region11: #{tpu_custom_call.1} parent=5 // pred_region
        %s207 = ssub.s32 %s21, 1
        // Predicated region
        $region13: #{tpu_custom_call.1} parent=11 // pred_check
          %p208 = pneg %p116
        $region14: #{tpu_custom_call.1} parent=11 // pred_check_branch
          %210 = sbr.rel (%p208) target = $region16
        $region15: #{tpu_custom_call.1} parent=11 // pred_region
          %s212 = ssub.s32 192, 192
          %213 = vsyncadd [#allocation7], %s212
          %s214 = sshll.u32 [#allocation8], 4
          %s215 = int_to_ptr.vmem [resolvable:$true] %s214
          %220 = dma.hbm_to_vmem [thread:$0]  %s2, 192, %s215, [#allocation7], 64, 64, 4
        $region16: #{tpu_custom_call.1} parent=11 // pred_fallthru
          _
        // Predicated region
        $region17: #{tpu_custom_call.1} parent=11 // pred_check
          %p221 = pneg %p137
        $region18: #{tpu_custom_call.1} parent=11 // pred_check_branch
          %223 = sbr.rel (%p221) target = $region20
        $region19: #{tpu_custom_call.1} parent=11 // pred_region
          _
        $region20: #{tpu_custom_call.1} parent=11 // pred_fallthru
          _
      $region12: #{tpu_custom_call.1} parent=5 // pred_fallthru
        _
      %p224 = scmp.lt.s32.totalorder %s21, 2
      // Predicated region
      $region21: #{tpu_custom_call.1} parent=5 // pred_check
        %p225 = pneg %p224
      $region22: #{tpu_custom_call.1} parent=5 // pred_check_branch
        %227 = sbr.rel (%p225) target = $region24
      $region23: #{tpu_custom_call.1} parent=5 // pred_region
        // Predicated region
        $region25: #{tpu_custom_call.1} parent=23 // pred_check
          %p228 = pneg %p61
        $region26: #{tpu_custom_call.1} parent=23 // pred_check_branch
          %230 = sbr.rel (%p228) target = $region28
        $region27: #{tpu_custom_call.1} parent=23 // pred_region
          %s231 = sand.u32 %s51, 1
          %s232 = scalar_lea.sflag [#allocation4], %s231
          %s233 = sand.u32 %s51, 1
          %s234 = smul.addr %s233, 4
          %s235 = scalar_lea.vmem [#allocation3], %s234
          %s236 = ssub.s32 %s29, 1
          %p237 = scmp.gt.s32.totalorder %s236, 0
          %s238 = scalar_select %p237, %s236, 0
          %s240 = ssub.s32 64, 64
          %241 = vsyncadd %s232, %s240
          %s242 = sadd.s32 %s238, %s28
          %s243 = smul.addr %s242, 64
          %s244 = scalar_lea.hbm %s0, %s243
          %s246 = sshll.u32 %s235, 4
          %s247 = int_to_ptr.vmem [resolvable:$true] %s246
          %249 = dma.hbm_to_vmem [thread:$0]  %s244, 64, %s247, %s232
        $region28: #{tpu_custom_call.1} parent=23 // pred_fallthru
          _
        // Predicated region
        $region29: #{tpu_custom_call.1} parent=23 // pred_check
          %p250 = pneg %p89
        $region30: #{tpu_custom_call.1} parent=23 // pred_check_branch
          %252 = sbr.rel (%p250) target = $region32
        $region31: #{tpu_custom_call.1} parent=23 // pred_region
          %s253 = sand.u32 %s21, 1
          %s254 = scalar_lea.sflag [#allocation7], %s253
          %s255 = sand.u32 %s79, 1
          %s256 = smul.addr %s255, 4
          %s257 = scalar_lea.vmem [#allocation6], %s256
          %s259 = ssub.s32 64, 64
          %260 = vsyncadd %s254, %s259
          %s261 = sadd.s32 %s29, %s28
          %s262 = smul.addr %s261, 64
          %s263 = scalar_lea.hbm %s1, %s262
          %s265 = sshll.u32 %s257, 4
          %s266 = int_to_ptr.vmem [resolvable:$true] %s265
          %268 = dma.hbm_to_vmem [thread:$0]  %s263, 64, %s266, %s254
        $region32: #{tpu_custom_call.1} parent=23 // pred_fallthru
          _
      $region24: #{tpu_custom_call.1} parent=5 // pred_fallthru
        _
      %p269 = scmp.le.s32.totalorder 1, %s21
      %p270 = scmp.lt.s32.totalorder %s21, 3
      %p271 = pnand %p269, %p270
      %p272 = pneg %p271
      // Predicated region
      $region33: #{tpu_custom_call.1} parent=5 // pred_check
        _
      $region34: #{tpu_custom_call.1} parent=5 // pred_check_branch
        %274 = sbr.rel (%p271) target = $region36
      $region35: #{tpu_custom_call.1} parent=5 // pred_region
        %s275 = ssub.s32 %s21, 1
        %s276 = sand.u32 %s54, 1
        %s277 = scalar_lea.sflag [#allocation4], %s276
        %s278 = sand.u32 %s54, 1
        %s279 = smul.addr %s278, 4
        %s280 = scalar_lea.vmem [#allocation3], %s279
        // Predicated region
        $region37: #{tpu_custom_call.1} parent=35 // pred_check
          %p281 = pneg %p67
        $region38: #{tpu_custom_call.1} parent=35 // pred_check_branch
          %283 = sbr.rel (%p281) target = $region40
        $region39: #{tpu_custom_call.1} parent=35 // pred_region
          %284 = dma.done %s277, 64
        $region40: #{tpu_custom_call.1} parent=35 // pred_fallthru
          _
        %s285 = sand.u32 %s26, 1
        %s286 = scalar_lea.sflag [#allocation7], %s285
        %s287 = sand.u32 %s82, 1
        %s288 = smul.addr %s287, 4
        %s289 = scalar_lea.vmem [#allocation6], %s288
        // Predicated region
        $region41: #{tpu_custom_call.1} parent=35 // pred_check
          %p290 = pneg %p95
        $region42: #{tpu_custom_call.1} parent=35 // pred_check_branch
          %292 = sbr.rel (%p290) target = $region44
        $region43: #{tpu_custom_call.1} parent=35 // pred_region
          %293 = dma.done %s286, 64
        $region44: #{tpu_custom_call.1} parent=35 // pred_fallthru
          _
        // Predicated region
        $region45: #{tpu_custom_call.1} parent=35 // pred_check
          %p294 = pneg %p116
        $region46: #{tpu_custom_call.1} parent=35 // pred_check_branch
          %296 = sbr.rel (%p294) target = $region48
        $region47: #{tpu_custom_call.1} parent=35 // pred_region
          %297 = dma.done [#allocation7], 192
        $region48: #{tpu_custom_call.1} parent=35 // pred_fallthru
          _
        %s298 = sand.u32 %s54, 1
        %s299 = scalar_lea.sflag [#allocation4], %s298
        %s300 = sand.u32 %s54, 1
        %s301 = smul.addr %s300, 4
        %s302 = scalar_lea.vmem [#allocation3], %s301
        %p303 = pneg %p67
        %p304 = pneg %p64
        %s305 = sand.u32 %s26, 1
        %s306 = scalar_lea.sflag [#allocation7], %s305
        %s307 = sand.u32 %s82, 1
        %s308 = smul.addr %s307, 4
        %s309 = scalar_lea.vmem [#allocation6], %s308
        %p310 = pneg %p95
        %p311 = pneg %p92
        %p312 = pneg %p116
        %p313 = pneg %p113
        %p314 = pneg %p137
        %p315 = pneg %p134
        %p316 = pneg %p165
        %p317 = pneg %p162
        %s318 = sand.u32 %s152, 1
        %s319 = scalar_lea.sflag [#allocation5], %s318
        %s320 = sand.u32 %s152, 1
        %s321 = smul.addr %s320, 4
        %s322 = scalar_lea.vmem [#allocation9], %s321
        %p323 = pneg %p193
        %p324 = pneg %p190
        %p325 = scmp.lt.s32.totalorder %s30, 1
        %s326 = scalar_select %p325, %s30, 1
        %p327 = scmp.lt.s32.totalorder %s31, 0
        %s328 = scalar_select %p327, %s31, 0
        %s329 = sadd.s32 %s328, %s326
        %s330 = smul.addr %s329, 4
        %s331 = scalar_lea.vmem %s5, %s330
        %s332 = ssub.s32 %s31, 1
        %p333 = scmp.gt.s32.totalorder %s332, 0
        %s334 = scalar_select %p333, %s332, 0
        %p335 = scmp.lt.s32.totalorder %s30, 1
        %s336 = scalar_select %p335, %s30, 1
        %p337 = scmp.lt.s32.totalorder %s31, 0
        %s338 = scalar_select %p337, %s31, 0
        %s339 = sadd.s32 %s338, %s336
        %s340 = smul.addr %s339, 4
        %s341 = scalar_lea.vmem %s5, %s340
        %p342 = scmp.eq.s32.totalorder %s31, 0
        // Predicated region
        $region49: #{tpu_custom_call.1} parent=35 // pred_check
          %p343 = pneg %p342
        $region50: #{tpu_custom_call.1} parent=35 // pred_check_branch
          %345 = sbr.rel (%p343) target = $region52
        $region51: #{tpu_custom_call.1} parent=35 // pred_region
          %346 = vst [vmem:[#allocation2] sm:$0xf] 0.0
        $region52: #{tpu_custom_call.1} parent=35 // pred_fallthru
          _
        %p347 = scmp.gt.s32.totalorder %s31, 0
        // Predicated region
        $region53: #{tpu_custom_call.1} parent=35 // pred_check
          %p348 = pneg %p347
        $region54: #{tpu_custom_call.1} parent=35 // pred_check_branch
          %350 = sbr.rel (%p348) target = $region56
        $region55: #{tpu_custom_call.1} parent=35 // pred_region
          %v351 = vld [vmem:[%s280] sm:$0xf]
          %352 = vst [vmem:[#allocation2] sm:$0xf] %v351
        $region56: #{tpu_custom_call.1} parent=35 // pred_fallthru
          _
        %v353 = vld [vmem:[%s289] sm:$0xf]
        %354 = vst [vmem:[#allocation2 + $0x4] sm:$0xf] %v353
        %v355 = vld [vmem:[#allocation2] sm:$0xff]
        %v356 = vld [vmem:[#allocation8] sm:$0xf]
        %s357 = scalar_lea.vmem [#allocation8], 4
        %v358 = vld [vmem:[%s357] sm:$0xf]
        %v360 = vcombine.high %v355, %v355
        %361 = vrot.lane.b32.xlu0 %v355, 2
        %v362 = vpop.permute.xlu0 %361
        %363 = vrot.lane.b32.xlu0 %v360, 2
        %v364 = vpop.permute.xlu0 %363
        %vm365 = vcmask 15360
        %v366 = vsel %vm365, %v362, %v364
        %vm367 = vcmask 31744
        %v369 = vsel %vm367, %v358, 0
        %vm371 = vcmask 1043456
        %v372 = vsel %vm371, %v366, 0
        %374 = vmatprep.subr.mxu0 0.0
        %375 = vmatpush1.msra.mxu0 0.0
        %376 = vmatprep.subr.mxu0 0.0
        %377 = vmatpush1.msra.mxu0 0.0
        %378 = vmatprep.subr.mxu0 0.0
        %379 = vmatpush1.msra.mxu0 0.0
        %380 = vmatprep.subr.mxu0 0.0
        %381 = vmatpush1.msra.mxu0 0.0
        %382 = vmatprep.subr.mxu0 0.0
        %383 = vmatpush1.msra.mxu0 0.0
        %384 = vmatprep.subr.mxu0 0.0
        %385 = vmatpush1.msra.mxu0 0.0
        %386 = vmatprep.subr.mxu0 0.0
        %387 = vmatpush1.msra.mxu0 0.0
        %388 = vmatprep.subr.mxu0 0.0
        %389 = vmatpush1.msra.mxu0 0.0
        %390 = vmatprep.subr.mxu0 0.0
        %391 = vmatpush1.msra.mxu0 0.0
        %392 = vmatprep.subr.mxu0 0.0
        %393 = vmatpush1.msra.mxu0 0.0
        %394 = vmatprep.subr.mxu0 0.0
        %395 = vmatpush1.msra.mxu0 0.0
        %396 = vmatprep.subr.mxu0 0.0
        %397 = vmatpush1.msra.mxu0 0.0
        %398 = vmatprep.subr.mxu0 0.0
        %399 = vmatpush1.msra.mxu0 0.0
        %400 = vmatprep.subr.mxu0 0.0
        %401 = vmatpush1.msra.mxu0 0.0
        %402 = vmatprep.subr.mxu0 0.0
        %403 = vmatpush1.msra.mxu0 0.0
        %404 = vmatprep.subr.mxu0 0.0
        %405 = vmatpush1.msra.mxu0 %v372
        %406 = vmatprep.subr.mxu0 0.0
        %407 = vmatpush2.msra.mxu0 0.0
        %408 = vmatprep.subr.mxu0 0.0
        %409 = vmatpush2.msra.mxu0 0.0
        %410 = vmatprep.subr.mxu0 0.0
        %411 = vmatpush2.msra.mxu0 0.0
        %412 = vmatprep.subr.mxu0 0.0
        %413 = vmatpush2.msra.mxu0 0.0
        %414 = vmatprep.subr.mxu0 0.0
        %415 = vmatpush2.msra.mxu0 0.0
        %416 = vmatprep.subr.mxu0 0.0
        %417 = vmatpush2.msra.mxu0 0.0
        %418 = vmatprep.subr.mxu0 0.0
        %419 = vmatpush2.msra.mxu0 0.0
        %420 = vmatprep.subr.mxu0 0.0
        %421 = vmatpush2.msra.mxu0 0.0
        %422 = vmatprep.subr.mxu0 0.0
        %423 = vmatpush2.msra.mxu0 0.0
        %424 = vmatprep.subr.mxu0 0.0
        %425 = vmatpush2.msra.mxu0 0.0
        %426 = vmatprep.subr.mxu0 0.0
        %427 = vmatpush2.msra.mxu0 0.0
        %428 = vmatprep.subr.mxu0 0.0
        %429 = vmatpush2.msra.mxu0 0.0
        %430 = vmatprep.subr.mxu0 0.0
        %431 = vmatpush2.msra.mxu0 0.0
        %432 = vmatprep.subr.mxu0 0.0
        %433 = vmatpush2.msra.mxu0 0.0
        %434 = vmatprep.subr.mxu0 0.0
        %435 = vmatpush2.msra.mxu0 0.0
        %436 = vmatprep.subr.mxu0 0.0
        %437 = vmatpush2.msra.mxu0 0.0
        %438 = vmatprep.mubr.f32.mxu0 0.0
        %439 = vmatmul.mubr.f32.gmra.mxu0 %v369
        %v440 = vpop.f32.mrf.mxu0
        %v441 = vadd.f32 0.0, %v440
        %v442 = vpop.f32.mrf.mxu0
        %443 = vdwg.mxu0
        %444 = vrot.lane.b32.xlu0 %v355, 4
        %v445 = vpop.permute.xlu0 %444
        %446 = vrot.lane.b32.xlu0 %v360, 4
        %v447 = vpop.permute.xlu0 %446
        %v448 = vsel %vm367, %v445, %v447
        %v450 = vsel %vm367, %v356, 0
        %v452 = vsel %vm371, %v448, 0
        %454 = vmatprep.subr.mxu0 0.0
        %455 = vmatpush1.msra.mxu0 0.0
        %456 = vmatprep.subr.mxu0 0.0
        %457 = vmatpush1.msra.mxu0 0.0
        %458 = vmatprep.subr.mxu0 0.0
        %459 = vmatpush1.msra.mxu0 0.0
        %460 = vmatprep.subr.mxu0 0.0
        %461 = vmatpush1.msra.mxu0 0.0
        %462 = vmatprep.subr.mxu0 0.0
        %463 = vmatpush1.msra.mxu0 0.0
        %464 = vmatprep.subr.mxu0 0.0
        %465 = vmatpush1.msra.mxu0 0.0
        %466 = vmatprep.subr.mxu0 0.0
        %467 = vmatpush1.msra.mxu0 0.0
        %468 = vmatprep.subr.mxu0 0.0
        %469 = vmatpush1.msra.mxu0 0.0
        %470 = vmatprep.subr.mxu0 0.0
        %471 = vmatpush1.msra.mxu0 0.0
        %472 = vmatprep.subr.mxu0 0.0
        %473 = vmatpush1.msra.mxu0 0.0
        %474 = vmatprep.subr.mxu0 0.0
        %475 = vmatpush1.msra.mxu0 0.0
        %476 = vmatprep.subr.mxu0 0.0
        %477 = vmatpush1.msra.mxu0 0.0
        %478 = vmatprep.subr.mxu0 0.0
        %479 = vmatpush1.msra.mxu0 0.0
        %480 = vmatprep.subr.mxu0 0.0
        %481 = vmatpush1.msra.mxu0 0.0
        %482 = vmatprep.subr.mxu0 0.0
        %483 = vmatpush1.msra.mxu0 0.0
        %484 = vmatprep.subr.mxu0 0.0
        %485 = vmatpush1.msra.mxu0 %v452
        %486 = vmatprep.subr.mxu0 0.0
        %487 = vmatpush2.msra.mxu0 0.0
        %488 = vmatprep.subr.mxu0 0.0
        %489 = vmatpush2.msra.mxu0 0.0
        %490 = vmatprep.subr.mxu0 0.0
        %491 = vmatpush2.msra.mxu0 0.0
        %492 = vmatprep.subr.mxu0 0.0
        %493 = vmatpush2.msra.mxu0 0.0
        %494 = vmatprep.subr.mxu0 0.0
        %495 = vmatpush2.msra.mxu0 0.0
        %496 = vmatprep.subr.mxu0 0.0
        %497 = vmatpush2.msra.mxu0 0.0
        %498 = vmatprep.subr.mxu0 0.0
        %499 = vmatpush2.msra.mxu0 0.0
        %500 = vmatprep.subr.mxu0 0.0
        %501 = vmatpush2.msra.mxu0 0.0
        %502 = vmatprep.subr.mxu0 0.0
        %503 = vmatpush2.msra.mxu0 0.0
        %504 = vmatprep.subr.mxu0 0.0
        %505 = vmatpush2.msra.mxu0 0.0
        %506 = vmatprep.subr.mxu0 0.0
        %507 = vmatpush2.msra.mxu0 0.0
        %508 = vmatprep.subr.mxu0 0.0
        %509 = vmatpush2.msra.mxu0 0.0
        %510 = vmatprep.subr.mxu0 0.0
        %511 = vmatpush2.msra.mxu0 0.0
        %512 = vmatprep.subr.mxu0 0.0
        %513 = vmatpush2.msra.mxu0 0.0
        %514 = vmatprep.subr.mxu0 0.0
        %515 = vmatpush2.msra.mxu0 0.0
        %516 = vmatprep.subr.mxu0 0.0
        %517 = vmatpush2.msra.mxu0 0.0
        %518 = vmatprep.mubr.f32.mxu0 0.0
        %519 = vmatmul.mubr.f32.gmra.mxu0 %v450
        %v520 = vpop.f32.mrf.mxu0
        %v521 = vadd.f32 %v441, %v520
        %v522 = vpop.f32.mrf.mxu0
        %523 = vdwg.mxu0
        %v524 = vld [vmem:[#allocation2 + $0x4] sm:$0xf]
        %s525 = scalar_lea.vmem [#allocation8], 8
        %v526 = vld [vmem:[%s525] sm:$0xf]
        %v528 = vsel %vm367, %v526, 0
        %v531 = vsel %vm371, %v524, 0
        %533 = vmatprep.subr.mxu0 0.0
        %534 = vmatpush1.msra.mxu0 0.0
        %535 = vmatprep.subr.mxu0 0.0
        %536 = vmatpush1.msra.mxu0 0.0
        %537 = vmatprep.subr.mxu0 0.0
        %538 = vmatpush1.msra.mxu0 0.0
        %539 = vmatprep.subr.mxu0 0.0
        %540 = vmatpush1.msra.mxu0 0.0
        %541 = vmatprep.subr.mxu0 0.0
        %542 = vmatpush1.msra.mxu0 0.0
        %543 = vmatprep.subr.mxu0 0.0
        %544 = vmatpush1.msra.mxu0 0.0
        %545 = vmatprep.subr.mxu0 0.0
        %546 = vmatpush1.msra.mxu0 0.0
        %547 = vmatprep.subr.mxu0 0.0
        %548 = vmatpush1.msra.mxu0 0.0
        %549 = vmatprep.subr.mxu0 0.0
        %550 = vmatpush1.msra.mxu0 0.0
        %551 = vmatprep.subr.mxu0 0.0
        %552 = vmatpush1.msra.mxu0 0.0
        %553 = vmatprep.subr.mxu0 0.0
        %554 = vmatpush1.msra.mxu0 0.0
        %555 = vmatprep.subr.mxu0 0.0
        %556 = vmatpush1.msra.mxu0 0.0
        %557 = vmatprep.subr.mxu0 0.0
        %558 = vmatpush1.msra.mxu0 0.0
        %559 = vmatprep.subr.mxu0 0.0
        %560 = vmatpush1.msra.mxu0 0.0
        %561 = vmatprep.subr.mxu0 0.0
        %562 = vmatpush1.msra.mxu0 0.0
        %563 = vmatprep.subr.mxu0 0.0
        %564 = vmatpush1.msra.mxu0 %v531
        %565 = vmatprep.subr.mxu0 0.0
        %566 = vmatpush2.msra.mxu0 0.0
        %567 = vmatprep.subr.mxu0 0.0
        %568 = vmatpush2.msra.mxu0 0.0
        %569 = vmatprep.subr.mxu0 0.0
        %570 = vmatpush2.msra.mxu0 0.0
        %571 = vmatprep.subr.mxu0 0.0
        %572 = vmatpush2.msra.mxu0 0.0
        %573 = vmatprep.subr.mxu0 0.0
        %574 = vmatpush2.msra.mxu0 0.0
        %575 = vmatprep.subr.mxu0 0.0
        %576 = vmatpush2.msra.mxu0 0.0
        %577 = vmatprep.subr.mxu0 0.0
        %578 = vmatpush2.msra.mxu0 0.0
        %579 = vmatprep.subr.mxu0 0.0
        %580 = vmatpush2.msra.mxu0 0.0
        %581 = vmatprep.subr.mxu0 0.0
        %582 = vmatpush2.msra.mxu0 0.0
        %583 = vmatprep.subr.mxu0 0.0
        %584 = vmatpush2.msra.mxu0 0.0
        %585 = vmatprep.subr.mxu0 0.0
        %586 = vmatpush2.msra.mxu0 0.0
        %587 = vmatprep.subr.mxu0 0.0
        %588 = vmatpush2.msra.mxu0 0.0
        %589 = vmatprep.subr.mxu0 0.0
        %590 = vmatpush2.msra.mxu0 0.0
        %591 = vmatprep.subr.mxu0 0.0
        %592 = vmatpush2.msra.mxu0 0.0
        %593 = vmatprep.subr.mxu0 0.0
        %594 = vmatpush2.msra.mxu0 0.0
        %595 = vmatprep.subr.mxu0 0.0
        %596 = vmatpush2.msra.mxu0 0.0
        %597 = vmatprep.mubr.f32.mxu0 0.0
        %598 = vmatmul.mubr.f32.gmra.mxu0 %v528
        %v599 = vpop.f32.mrf.mxu0
        %v600 = vadd.f32 0.0, %v599
        %v601 = vpop.f32.mrf.mxu0
        %602 = vdwg.mxu0
        %v603 = vadd.f32 %v521, %v600
        %v604 = vld [vmem:[%s3] sm:$0xf]
        %606 = vset.pattern.permute.xlu0 0
        %607 = vperm.xlu0 %606, %v604
        %v608 = vpop.permute.xlu0 %607
        %v610 = vadd.f32 %v603, %v608
        %611 = vst [vmem:[%s322] sm:$0xf] %v610
        // Predicated region
        $region57: #{tpu_custom_call.1} parent=35 // pred_check
          %p612 = pneg %p342
        $region58: #{tpu_custom_call.1} parent=35 // pred_check_branch
          %614 = sbr.rel (%p612) target = $region60
        $region59: #{tpu_custom_call.1} parent=35 // pred_region
          %v615 = vlaneseq
          %v616 = vand.u32 %v615, 127
          %s617 = smul.u32 %s31, 128
          %v618 = vstv %s617
          %v619 = vadd.s32 %v616, %v618
          %vm620 = vcmp.lt.s32.totalorder %v619, 16
          %v621 = vsel %vm620, 1, 0
          %vm622 = vcmp.eq.s32.totalorder %v621, 1
          %v623 = vsel %vm622, %v610, 0.0
          %v624 = vsel %vm371, %v623, 0.0
          %625 = vadd.xlane.f32.xlu0 %v624
          %v626 = vpop.xlane.xlu0 %625
          %v627 = vmul.f32 %v623, %v623
          %v628 = vsel %vm371, %v627, 0.0
          %629 = vadd.xlane.f32.xlu0 %v628
          %v630 = vpop.xlane.xlu0 %629
          %vm631 = vcmask 7168
          %v632 = vsel %vm631, %v626, %v630
          %vm633 = vcmask 11264
          %634 = vst.msk [vmem:[%s341] sm:$0xf] %vm633, %v632
        $region60: #{tpu_custom_call.1} parent=35 // pred_fallthru
          _
        %p635 = scmp.ne.s32.totalorder %s31, 0
        // Predicated region
        $region61: #{tpu_custom_call.1} parent=35 // pred_check
          %p636 = pneg %p635
        $region62: #{tpu_custom_call.1} parent=35 // pred_check_branch
          %638 = sbr.rel (%p636) target = $region64
        $region63: #{tpu_custom_call.1} parent=35 // pred_region
          %v639 = vsel %vm371, %v610, 0.0
          %640 = vadd.xlane.f32.xlu0 %v639
          %v641 = vpop.xlane.xlu0 %640
          %v642 = vmul.f32 %v610, %v610
          %v643 = vsel %vm371, %v642, 0.0
          %644 = vadd.xlane.f32.xlu0 %v643
          %v645 = vpop.xlane.xlu0 %644
          %vm646 = vcmask 7168
          %v647 = vsel %vm646, %v641, %v645
          %vm648 = vcmask 11264
          %649 = vst.msk [vmem:[%s341] sm:$0xf] %vm648, %v647
        $region64: #{tpu_custom_call.1} parent=35 // pred_fallthru
          _
        %s650 = sand.u32 %s152, 1
        %s651 = scalar_lea.sflag [#allocation5], %s650
        %s652 = sand.u32 %s152, 1
        %s653 = smul.addr %s652, 4
        %s654 = scalar_lea.vmem [#allocation9], %s653
        %p655 = scmp.lt.s32.totalorder %s30, 1
        %s656 = scalar_select %p655, %s30, 1
        %p657 = scmp.lt.s32.totalorder %s31, 0
        %s658 = scalar_select %p657, %s31, 0
        %s659 = sadd.s32 %s658, %s656
        %s660 = smul.addr %s659, 4
        %s661 = scalar_lea.vmem %s5, %s660
        // Predicated region
        $region65: #{tpu_custom_call.1} parent=35 // pred_check
          %p662 = pneg %p162
        $region66: #{tpu_custom_call.1} parent=35 // pred_check_branch
          %664 = sbr.rel (%p662) target = $region68
        $region67: #{tpu_custom_call.1} parent=35 // pred_region
          %s666 = ssub.s32 64, 64
          %667 = vsyncadd %s651, %s666
          %s668 = sadd.s32 %s31, %s30
          %s669 = smul.addr %s668, 64
          %s670 = scalar_lea.hbm %s4, %s669
          %s672 = sshll.u32 %s654, 4
          %s673 = int_to_ptr.vmem [resolvable:$true] %s672
          %675 = dma.vmem_to_hbm [thread:$0]  %s673, 64, %s670, %s651
        $region68: #{tpu_custom_call.1} parent=35 // pred_fallthru
          _
        // Predicated region
        $region69: #{tpu_custom_call.1} parent=35 // pred_check
          %p676 = pneg %p190
        $region70: #{tpu_custom_call.1} parent=35 // pred_check_branch
          %678 = sbr.rel (%p676) target = $region72
        $region71: #{tpu_custom_call.1} parent=35 // pred_region
          _
        $region72: #{tpu_custom_call.1} parent=35 // pred_fallthru
          _
      $region36: #{tpu_custom_call.1} parent=5 // pred_fallthru
        _
      %p679 = scmp.le.s32.totalorder 2, %s21
      // Predicated region
      $region73: #{tpu_custom_call.1} parent=5 // pred_check
        %p680 = pneg %p679
      $region74: #{tpu_custom_call.1} parent=5 // pred_check_branch
        %682 = sbr.rel (%p680) target = $region76
      $region75: #{tpu_custom_call.1} parent=5 // pred_region
        %s683 = ssub.s32 %s21, 2
        // Predicated region
        $region77: #{tpu_custom_call.1} parent=75 // pred_check
          %p684 = pneg %p168
        $region78: #{tpu_custom_call.1} parent=75 // pred_check_branch
          %686 = sbr.rel (%p684) target = $region80
        $region79: #{tpu_custom_call.1} parent=75 // pred_region
          %s687 = sand.u32 %s153, 1
          %s688 = scalar_lea.sflag [#allocation5], %s687
          %s689 = sand.u32 %s153, 1
          %s690 = smul.addr %s689, 4
          %s691 = scalar_lea.vmem [#allocation9], %s690
          %692 = dma.done %s688, 64
        $region80: #{tpu_custom_call.1} parent=75 // pred_fallthru
          _
        // Predicated region
        $region81: #{tpu_custom_call.1} parent=75 // pred_check
          %p693 = pneg %p196
        $region82: #{tpu_custom_call.1} parent=75 // pred_check_branch
          %695 = sbr.rel (%p693) target = $region84
        $region83: #{tpu_custom_call.1} parent=75 // pred_region
          %p696 = scmp.lt.s32.totalorder %s32, 1
          %s697 = scalar_select %p696, %s32, 1
          %p698 = scmp.lt.s32.totalorder %s33, 0
          %s699 = scalar_select %p698, %s33, 0
          %s700 = sadd.s32 %s699, %s697
          %s701 = smul.addr %s700, 4
          %s702 = scalar_lea.vmem %s5, %s701
        $region84: #{tpu_custom_call.1} parent=75 // pred_fallthru
          _
      $region76: #{tpu_custom_call.1} parent=5 // pred_fallthru
        _
    $region6: #{tpu_custom_call.1} parent=1 // loop_footer
      %s25 = sadd.s32 1, %s21
    $region7: #{tpu_custom_call.1} parent=1 // loop_footer_branch
      %20 = sbr.rel target = $region3
    $region8: #{tpu_custom_call.1} parent=1 // loop_exit
      _
    %703 = vsyncpa [#allocation4], 1
    %s704 = scalar_lea.sflag [#allocation4], 1
    %705 = vsyncpa %s704, 1
    %706 = vsyncpa [#allocation7], 1
    %s707 = scalar_lea.sflag [#allocation7], 1
    %708 = vsyncpa %s707, 1
    %709 = vsyncpa [#allocation5], 1
    %s710 = scalar_lea.sflag [#allocation5], 1
    %711 = vsyncpa %s710, 1

</llo_original>
